<compile_context>
chip_gen: v7x
topology: tpu7x:2x2x1
jax: 0.10.0
libtpu: 0.0.40
codegen_flags: <defaults>
</compile_context>

<pallas_src>
import functools

import jax
import jax.numpy as jnp
from jax import lax
from jax.experimental import pallas as pl
from jax.experimental.pallas import tpu as pltpu


def _round_up(x, m):
    return pl.cdiv(x, m) * m


# Per-TC residency budget for the table (safe even on v7x: 64 MiB physical,
# and the table must fit per-TensorCore, not per-chip).
_RESIDENT_TABLE_BYTES_MAX = 12 * 1024 * 1024


# ---------------------------------------------------------------------------
# Path A: VMEM-resident table, one-hot @ table on the MXU, vocab chunked
#         in-kernel (no accumulator scratch, table DMA'd once).
# ---------------------------------------------------------------------------
def _resident_lookup_kernel(ids_ref, table_ref, out_ref, *, vocab_block):
    # ids_ref:   (TB, 1)          int32 — this token block's ids
    # table_ref: (V_pad, D_pad)   table dtype — whole (padded) table, resident
    # out_ref:   (TB, D_pad)      table dtype
    ids = ids_ref[...]
    tb, d = out_ref.shape
    v_pad = table_ref.shape[0]
    n_chunks = v_pad // vocab_block

    # Hoisted iota (0 .. vocab_block-1) reused for every chunk.
    col = lax.broadcasted_iota(jnp.int32, (tb, vocab_block), 1)

    if n_chunks == 1:
        onehot = (col == ids).astype(table_ref.dtype)
        acc = jnp.dot(onehot, table_ref[...], preferred_element_type=jnp.float32)
    else:
        def chunk_dot(c, acc):
            # Offset on the small (TB,1) operand, not the (TB,VB) iota.
            local = ids - c * vocab_block
            onehot = (col == local).astype(table_ref.dtype)
            start = pl.multiple_of(c * vocab_block, vocab_block)
            chunk = table_ref[pl.ds(start, vocab_block), :]
            return acc + jnp.dot(onehot, chunk,
                                 preferred_element_type=jnp.float32)

        acc = lax.fori_loop(0, n_chunks, chunk_dot,
                            jnp.zeros((tb, d), jnp.float32))

    out_ref[...] = acc.astype(out_ref.dtype)


def _resident_path(flat_ids, table, *, v, d, v_pad, d_pad, vocab_block,
                   token_block, mxu_dtype, out_dtype):
    t = flat_ids.shape[0]
    if token_block is None:
        # Bigger token blocks amortize per-step overhead; footprint ~ TB*D_pad.
        token_block = 512 if d_pad <= 1024 else 256
    t_pad = _round_up(max(t, 1), token_block)

    ids_2d = jnp.pad(flat_ids, (0, t_pad - t)).reshape(t_pad, 1)

    # One pad/cast per call (for production, pre-pad/cast once at module init).
    table_p = table
    if table_p.dtype != mxu_dtype:
        table_p = table_p.astype(mxu_dtype)   # host-side cast (avoid per-tile casts on v5e)
    if (v_pad, d_pad) != (v, d):
        table_p = jnp.pad(table_p, ((0, v_pad - v), (0, d_pad - d)))

    grid = (t_pad // token_block,)

    # Honest VMEM footprint (ids block lane-padded to 128; table counted x2
    # conservatively even though the constant index_map fetches it once).
    est_bytes = (
        2 * v_pad * d_pad * table_p.dtype.itemsize
        + 2 * token_block * 128 * 4
        + 2 * token_block * d_pad * jnp.dtype(out_dtype).itemsize
        + token_block * vocab_block * 4          # one-hot intermediate
        + token_block * d_pad * 4                # f32 accumulator value
    )
    vmem_limit = int(min(48 << 20, max(32 << 20, est_bytes + (4 << 20))))

    kernel = functools.partial(_resident_lookup_kernel, vocab_block=vocab_block)
    out = pl.pallas_call(
        kernel,
        out_shape=jax.ShapeDtypeStruct((t_pad, d_pad), out_dtype),
        grid_spec=pltpu.PrefetchScalarGridSpec(
            num_scalar_prefetch=0,
            grid=grid,
            in_specs=[
                # This token block's ids: a ~1-2 KiB DMA per step.
                pl.BlockSpec((token_block, 1), lambda i: (i, 0)),
                # Whole padded table, resident across the grid (DMA'd once).
                pl.BlockSpec((v_pad, d_pad), lambda i: (0, 0)),
            ],
            out_specs=pl.BlockSpec((token_block, d_pad), lambda i: (i, 0)),
        ),
        compiler_params=pltpu.CompilerParams(
            dimension_semantics=("parallel",),
            vmem_limit_bytes=vmem_limit,
        ),
    )(ids_2d, table_p)
    return out[:t, :d]


# ---------------------------------------------------------------------------
# Path B: scalar-prefetch DMA row gather (large vocab) — O(T*D) HBM traffic.
# ---------------------------------------------------------------------------
def _row_gather_kernel(ids_ref, row_ref, out_ref):
    del ids_ref                     # only used by the index_maps
    out_ref[...] = row_ref[...]


def _gather_path(flat_ids, table):
    t = flat_ids.shape[0]
    v, d = table.shape
    # Clamp so a bad id can never produce an OOB row DMA (PyTorch would raise).
    ids = jnp.clip(flat_ids, 0, v - 1).astype(jnp.int32)
    table_3d = table.reshape(v, 1, d)    # free view; no pad, no table copy

    out = pl.pallas_call(
        _row_gather_kernel,
        out_shape=jax.ShapeDtypeStruct((t, 1, d), table.dtype),
        grid_spec=pltpu.PrefetchScalarGridSpec(
            num_scalar_prefetch=1,
            grid=(t,),
            in_specs=[
                # One table row per grid step, selected by the prefetched ids.
                pl.BlockSpec((1, 1, d), lambda i, ids_ref: (ids_ref[i], 0, 0)),
            ],
            out_specs=pl.BlockSpec((1, 1, d), lambda i, ids_ref: (i, 0, 0)),
        ),
        compiler_params=pltpu.CompilerParams(
            dimension_semantics=("arbitrary",),
        ),
    )(ids, table_3d)
    return out.reshape(t, d)


# ---------------------------------------------------------------------------
# Public forward: table[token_ids]
# ---------------------------------------------------------------------------
@functools.partial(
    jax.jit, static_argnames=("token_block", "compute_dtype", "force_gather"))
def embedding_forward(token_ids, table, *, token_block=None, compute_dtype=None,
                      force_gather=False):
    """token_ids: int array of shape (...); table: (V, D). Returns (..., D)."""
    lead_shape = token_ids.shape
    v, d = table.shape
    out_dtype = table.dtype

    flat_ids = token_ids.reshape(-1).astype(jnp.int32)

    mxu_dtype = jnp.dtype(compute_dtype) if compute_dtype is not None else table.dtype
    d_pad = _round_up(d, 128)                       # lane-dense output stores
    vocab_block = min(512, _round_up(v, 128))
    v_pad = _round_up(v, vocab_block)
    resident_bytes = v_pad * d_pad * mxu_dtype.itemsize

    if force_gather or resident_bytes > _RESIDENT_TABLE_BYTES_MAX:
        out = _gather_path(flat_ids, table)
    else:
        out = _resident_path(flat_ids, table, v=v, d=d, v_pad=v_pad, d_pad=d_pad,
                             vocab_block=vocab_block, token_block=token_block,
                             mxu_dtype=mxu_dtype, out_dtype=out_dtype)
    return out.reshape(*lead_shape, d)


if __name__ == "__main__":
    # Module config (small, consistent with the PyTorch module's __init__).
    num_embeddings = 64      # vocabulary size V
    embedding_dim = 32       # D
    batch, seq = 2, 8

    key = jax.random.PRNGKey(0)
    k_table, k_ids = jax.random.split(key)

    # Deterministic parameter init: trunc_normal_(mean=0, std=1, a=-3, b=3).
    table = jax.random.truncated_normal(
        k_table, lower=-3.0, upper=3.0,
        shape=(num_embeddings, embedding_dim), dtype=jnp.float32)

    token_ids = jax.random.randint(
        k_ids, shape=(batch, seq), minval=0, maxval=num_embeddings,
        dtype=jnp.int32)

    ref = table[token_ids]

    # Path A: resident-table MXU lookup (exact in f32).
    out_a = jax.block_until_ready(embedding_forward(token_ids, table))
    assert out_a.shape == (batch, seq, embedding_dim), out_a.shape
    assert jnp.allclose(out_a, ref, atol=1e-6, rtol=0), "resident path mismatch"

    # Path B: scalar-prefetch DMA row gather (large-vocab path), forced here.
    out_b = jax.block_until_ready(
        embedding_forward(token_ids, table, force_gather=True))
    assert jnp.allclose(out_b, ref), "gather path mismatch"

    # Exercise the chunked resident path (vocab > one chunk, non-128 dims).
    v2, d2 = 700, 40
    k2t, k2i = jax.random.split(jax.random.PRNGKey(1))
    table2 = jax.random.truncated_normal(
        k2t, lower=-3.0, upper=3.0, shape=(v2, d2), dtype=jnp.float32)
    ids2 = jax.random.randint(k2i, shape=(3, 5), minval=0, maxval=v2,
                              dtype=jnp.int32)
    out2 = jax.block_until_ready(embedding_forward(ids2, table2))
    assert jnp.allclose(out2, table2[ids2], atol=1e-6, rtol=0), \
        "chunked resident path mismatch"

    print("KERNEL_OK")
</pallas_src>

<mosaic_0001>
module attributes {stable_mosaic.version = 11 : i64} {
  func.func @_resident_lookup_kernel(%arg0: i32, %arg1: memref<512x1xi32, #tpu.memory_space<vmem>>, %arg2: memref<128x128xf32, #tpu.memory_space<vmem>>, %arg3: memref<512x128xf32, #tpu.memory_space<vmem>>) attributes {dimension_semantics = [#tpu.dimension_semantics<parallel>], iteration_bounds = array<i64: 1>, scalar_prefetch = 0 : i64, scratch_operands = 0 : i64, tpu.core_type = #tpu.core_type<tc>, window_params = [{transform_indices = @transform_0, window_bounds = array<i64: 512, 1>}, {pipeline_mode = #tpu.pipeline_mode<synchronous>, transform_indices = @transform_1, window_bounds = array<i64: 128, 128>}, {transform_indices = @transform_2, window_bounds = array<i64: 512, 128>}]} {
    %c0 = arith.constant 0 : index
    %c0_0 = arith.constant 0 : index
    %0 = vector.load %arg1[%c0, %c0_0] : memref<512x1xi32, #tpu.memory_space<vmem>>, vector<512x1xi32>
    %1 = tpu.iota {dimensions = array<i32: 1>} : vector<512x128xi32>
    %2 = vector.broadcast %0 : vector<512x1xi32> to vector<512x128xi32>
    %3 = arith.cmpi eq, %1, %2 : vector<512x128xi32>
    %4 = arith.extui %3 : vector<512x128xi1> to vector<512x128xi32>
    %5 = arith.sitofp %4 : vector<512x128xi32> to vector<512x128xf32>
    %c0_1 = arith.constant 0 : index
    %c0_2 = arith.constant 0 : index
    %6 = vector.load %arg2[%c0_1, %c0_2] : memref<128x128xf32, #tpu.memory_space<vmem>>, vector<128x128xf32>
    %cst = arith.constant dense<0.000000e+00> : vector<512x128xf32>
    %7 = tpu.matmul %5, %6, %cst {dimension_numbers = #tpu.dot_dimension_numbers<[1], [0], [0], [1], [0, 0, 1, 1], [], []>} : vector<512x128xf32>, vector<128x128xf32>, vector<512x128xf32> -> vector<512x128xf32>
    %c0_3 = arith.constant 0 : index
    %c0_4 = arith.constant 0 : index
    %8 = vector.load %arg3[%c0_3, %c0_4] : memref<512x128xf32, #tpu.memory_space<vmem>>, vector<512x128xf32>
    tpu.vector_store %arg3[%c0_3, %c0_4], %7 {strides = array<i32>} : memref<512x128xf32, #tpu.memory_space<vmem>>, vector<512x128xf32>,
    return
  }
  func.func @transform_0(%arg0: i32) -> (i32, i32) {
    %c0_i32 = arith.constant 0 : i32
    %c0_i32_0 = arith.constant 0 : i32
    return %arg0, %c0_i32 : i32, i32
  }
  func.func @transform_1(%arg0: i32) -> (i32, i32) {
    %c0_i32 = arith.constant 0 : i32
    %c0_i32_0 = arith.constant 0 : i32
    %c0_i32_1 = arith.constant 0 : i32
    return %c0_i32, %c0_i32_0 : i32, i32
  }
  func.func @transform_2(%arg0: i32) -> (i32, i32) {
    %c0_i32 = arith.constant 0 : i32
    %c0_i32_0 = arith.constant 0 : i32
    return %arg0, %c0_i32 : i32, i32
  }
}

</mosaic_0001>

<llo_original>
// kernel: embedding_forward.1
$region0: #{embedding_forward.1}
  #allocation0 [shape = 'u32[]', space=smem, size = 0x4, offset = 0x4, fixed_abs, tag = 'smem constant byte address 0x4 - core index']
  #allocation1 [shape = 'u32[144,128]{1,0:T(1,128)}', space=vmem, size = 0x12000, scoped, tag = 'internal scratch']
  %s0 = inlined_call_operand.vmem [shape: s32[512,1], index: 0, kind: input, shape index: {}]
  %s1 = inlined_call_operand.vmem [shape: f32[128,128], index: 1, kind: input, shape index: {}]
  %s2 = inlined_call_operand.vmem [shape: f32[512,128], index: 2, kind: output, shape index: {}]
  %s3 = sld [smem:[#allocation0]]
  $region18: #{embedding_forward.1} parent=0
    _
  %s5 = ssub.s32 1, %s3
  %s6 = scalar_select 0, %s5, %s3
  // Predicated region
  $region2: #{embedding_forward.1} parent=0 // pred_check
    _
  $region3: #{embedding_forward.1} parent=0 // pred_check_branch
    %8 = sbr.rel (0) target = $region5
  $region4: #{embedding_forward.1} parent=0 // pred_region
    _
  $region5: #{embedding_forward.1} parent=0 // pred_fallthru
    _
  // Predicated region
  $region6: #{embedding_forward.1} parent=0 // pred_check
    _
  $region7: #{embedding_forward.1} parent=0 // pred_check_branch
    %10 = sbr.rel (0) target = $region9
  $region8: #{embedding_forward.1} parent=0 // pred_region
    _
  $region9: #{embedding_forward.1} parent=0 // pred_fallthru
    _
  %v11 = vld [vmem:[%s0] sm:$0xff]
  %v12 = vld [vmem:[%s0 + $0x8] sm:$0xff]
  %v13 = vld [vmem:[%s0 + $0x10] sm:$0xff]
  %v14 = vld [vmem:[%s0 + $0x18] sm:$0xff]
  %v15 = vld [vmem:[%s0 + $0x20] sm:$0xff]
  %v16 = vld [vmem:[%s0 + $0x28] sm:$0xff]
  %v17 = vld [vmem:[%s0 + $0x30] sm:$0xff]
  %v18 = vld [vmem:[%s0 + $0x38] sm:$0xff]
  %v19 = vld [vmem:[%s0 + $0x40] sm:$0xff]
  %v20 = vld [vmem:[%s0 + $0x48] sm:$0xff]
  %v21 = vld [vmem:[%s0 + $0x50] sm:$0xff]
  %v22 = vld [vmem:[%s0 + $0x58] sm:$0xff]
  %v23 = vld [vmem:[%s0 + $0x60] sm:$0xff]
  %v24 = vld [vmem:[%s0 + $0x68] sm:$0xff]
  %v25 = vld [vmem:[%s0 + $0x70] sm:$0xff]
  %v26 = vld [vmem:[%s0 + $0x78] sm:$0xff]
  %v27 = vld [vmem:[%s0 + $0x80] sm:$0xff]
  %v28 = vld [vmem:[%s0 + $0x88] sm:$0xff]
  %v29 = vld [vmem:[%s0 + $0x90] sm:$0xff]
  %v30 = vld [vmem:[%s0 + $0x98] sm:$0xff]
  %v31 = vld [vmem:[%s0 + $0xa0] sm:$0xff]
  %v32 = vld [vmem:[%s0 + $0xa8] sm:$0xff]
  %v33 = vld [vmem:[%s0 + $0xb0] sm:$0xff]
  %v34 = vld [vmem:[%s0 + $0xb8] sm:$0xff]
  %v35 = vld [vmem:[%s0 + $0xc0] sm:$0xff]
  %v36 = vld [vmem:[%s0 + $0xc8] sm:$0xff]
  %v37 = vld [vmem:[%s0 + $0xd0] sm:$0xff]
  %v38 = vld [vmem:[%s0 + $0xd8] sm:$0xff]
  %v39 = vld [vmem:[%s0 + $0xe0] sm:$0xff]
  %v40 = vld [vmem:[%s0 + $0xe8] sm:$0xff]
  %v41 = vld [vmem:[%s0 + $0xf0] sm:$0xff]
  %v42 = vld [vmem:[%s0 + $0xf8] sm:$0xff]
  %v43 = vld [vmem:[%s0 + $0x100] sm:$0xff]
  %v44 = vld [vmem:[%s0 + $0x108] sm:$0xff]
  %v45 = vld [vmem:[%s0 + $0x110] sm:$0xff]
  %v46 = vld [vmem:[%s0 + $0x118] sm:$0xff]
  %v47 = vld [vmem:[%s0 + $0x120] sm:$0xff]
  %v48 = vld [vmem:[%s0 + $0x128] sm:$0xff]
  %v49 = vld [vmem:[%s0 + $0x130] sm:$0xff]
  %v50 = vld [vmem:[%s0 + $0x138] sm:$0xff]
  %v51 = vld [vmem:[%s0 + $0x140] sm:$0xff]
  %v52 = vld [vmem:[%s0 + $0x148] sm:$0xff]
  %v53 = vld [vmem:[%s0 + $0x150] sm:$0xff]
  %v54 = vld [vmem:[%s0 + $0x158] sm:$0xff]
  %v55 = vld [vmem:[%s0 + $0x160] sm:$0xff]
  %v56 = vld [vmem:[%s0 + $0x168] sm:$0xff]
  %v57 = vld [vmem:[%s0 + $0x170] sm:$0xff]
  %v58 = vld [vmem:[%s0 + $0x178] sm:$0xff]
  %v59 = vld [vmem:[%s0 + $0x180] sm:$0xff]
  %v60 = vld [vmem:[%s0 + $0x188] sm:$0xff]
  %v61 = vld [vmem:[%s0 + $0x190] sm:$0xff]
  %v62 = vld [vmem:[%s0 + $0x198] sm:$0xff]
  %v63 = vld [vmem:[%s0 + $0x1a0] sm:$0xff]
  %v64 = vld [vmem:[%s0 + $0x1a8] sm:$0xff]
  %v65 = vld [vmem:[%s0 + $0x1b0] sm:$0xff]
  %v66 = vld [vmem:[%s0 + $0x1b8] sm:$0xff]
  %v67 = vld [vmem:[%s0 + $0x1c0] sm:$0xff]
  %v68 = vld [vmem:[%s0 + $0x1c8] sm:$0xff]
  %v69 = vld [vmem:[%s0 + $0x1d0] sm:$0xff]
  %v70 = vld [vmem:[%s0 + $0x1d8] sm:$0xff]
  %v71 = vld [vmem:[%s0 + $0x1e0] sm:$0xff]
  %v72 = vld [vmem:[%s0 + $0x1e8] sm:$0xff]
  %v73 = vld [vmem:[%s0 + $0x1f0] sm:$0xff]
  %v74 = vld [vmem:[%s0 + $0x1f8] sm:$0xff]
  %v75 = vlaneseq
  %v76 = vand.u32 %v75, 127
  %77 = vset.pattern.permute.xlu0 0
  %78 = vperm.xlu0 %77, %v11
  %v79 = vpop.permute.xlu0 %78
  %80 = vset.pattern.permute.xlu0 0
  %81 = vperm.xlu0 %80, %v12
  %v82 = vpop.permute.xlu0 %81
  %83 = vset.pattern.permute.xlu0 0
  %84 = vperm.xlu0 %83, %v13
  %v85 = vpop.permute.xlu0 %84
  %86 = vset.pattern.permute.xlu0 0
  %87 = vperm.xlu0 %86, %v14
  %v88 = vpop.permute.xlu0 %87
  %89 = vset.pattern.permute.xlu0 0
  %90 = vperm.xlu0 %89, %v15
  %v91 = vpop.permute.xlu0 %90
  %92 = vset.pattern.permute.xlu0 0
  %93 = vperm.xlu0 %92, %v16
  %v94 = vpop.permute.xlu0 %93
  %95 = vset.pattern.permute.xlu0 0
  %96 = vperm.xlu0 %95, %v17
  %v97 = vpop.permute.xlu0 %96
  %98 = vset.pattern.permute.xlu0 0
  %99 = vperm.xlu0 %98, %v18
  %v100 = vpop.permute.xlu0 %99
  %101 = vset.pattern.permute.xlu0 0
  %102 = vperm.xlu0 %101, %v19
  %v103 = vpop.permute.xlu0 %102
  %104 = vset.pattern.permute.xlu0 0
  %105 = vperm.xlu0 %104, %v20
  %v106 = vpop.permute.xlu0 %105
  %107 = vset.pattern.permute.xlu0 0
  %108 = vperm.xlu0 %107, %v21
  %v109 = vpop.permute.xlu0 %108
  %110 = vset.pattern.permute.xlu0 0
  %111 = vperm.xlu0 %110, %v22
  %v112 = vpop.permute.xlu0 %111
  %113 = vset.pattern.permute.xlu0 0
  %114 = vperm.xlu0 %113, %v23
  %v115 = vpop.permute.xlu0 %114
  %116 = vset.pattern.permute.xlu0 0
  %117 = vperm.xlu0 %116, %v24
  %v118 = vpop.permute.xlu0 %117
  %119 = vset.pattern.permute.xlu0 0
  %120 = vperm.xlu0 %119, %v25
  %v121 = vpop.permute.xlu0 %120
  %122 = vset.pattern.permute.xlu0 0
  %123 = vperm.xlu0 %122, %v26
  %v124 = vpop.permute.xlu0 %123
  %125 = vset.pattern.permute.xlu0 0
  %126 = vperm.xlu0 %125, %v27
  %v127 = vpop.permute.xlu0 %126
  %128 = vset.pattern.permute.xlu0 0
  %129 = vperm.xlu0 %128, %v28
  %v130 = vpop.permute.xlu0 %129
  %131 = vset.pattern.permute.xlu0 0
  %132 = vperm.xlu0 %131, %v29
  %v133 = vpop.permute.xlu0 %132
  %134 = vset.pattern.permute.xlu0 0
  %135 = vperm.xlu0 %134, %v30
  %v136 = vpop.permute.xlu0 %135
  %137 = vset.pattern.permute.xlu0 0
  %138 = vperm.xlu0 %137, %v31
  %v139 = vpop.permute.xlu0 %138
  %140 = vset.pattern.permute.xlu0 0
  %141 = vperm.xlu0 %140, %v32
  %v142 = vpop.permute.xlu0 %141
  %143 = vset.pattern.permute.xlu0 0
  %144 = vperm.xlu0 %143, %v33
  %v145 = vpop.permute.xlu0 %144
  %146 = vset.pattern.permute.xlu0 0
  %147 = vperm.xlu0 %146, %v34
  %v148 = vpop.permute.xlu0 %147
  %149 = vset.pattern.permute.xlu0 0
  %150 = vperm.xlu0 %149, %v35
  %v151 = vpop.permute.xlu0 %150
  %152 = vset.pattern.permute.xlu0 0
  %153 = vperm.xlu0 %152, %v36
  %v154 = vpop.permute.xlu0 %153
  %155 = vset.pattern.permute.xlu0 0
  %156 = vperm.xlu0 %155, %v37
  %v157 = vpop.permute.xlu0 %156
  %158 = vset.pattern.permute.xlu0 0
  %159 = vperm.xlu0 %158, %v38
  %v160 = vpop.permute.xlu0 %159
  %161 = vset.pattern.permute.xlu0 0
  %162 = vperm.xlu0 %161, %v39
  %v163 = vpop.permute.xlu0 %162
  %164 = vset.pattern.permute.xlu0 0
  %165 = vperm.xlu0 %164, %v40
  %v166 = vpop.permute.xlu0 %165
  %167 = vset.pattern.permute.xlu0 0
  %168 = vperm.xlu0 %167, %v41
  %v169 = vpop.permute.xlu0 %168
  %170 = vset.pattern.permute.xlu0 0
  %171 = vperm.xlu0 %170, %v42
  %v172 = vpop.permute.xlu0 %171
  %173 = vset.pattern.permute.xlu0 0
  %174 = vperm.xlu0 %173, %v43
  %v175 = vpop.permute.xlu0 %174
  %176 = vset.pattern.permute.xlu0 0
  %177 = vperm.xlu0 %176, %v44
  %v178 = vpop.permute.xlu0 %177
  %179 = vset.pattern.permute.xlu0 0
  %180 = vperm.xlu0 %179, %v45
  %v181 = vpop.permute.xlu0 %180
  %182 = vset.pattern.permute.xlu0 0
  %183 = vperm.xlu0 %182, %v46
  %v184 = vpop.permute.xlu0 %183
  %185 = vset.pattern.permute.xlu0 0
  %186 = vperm.xlu0 %185, %v47
  %v187 = vpop.permute.xlu0 %186
  %188 = vset.pattern.permute.xlu0 0
  %189 = vperm.xlu0 %188, %v48
  %v190 = vpop.permute.xlu0 %189
  %191 = vset.pattern.permute.xlu0 0
  %192 = vperm.xlu0 %191, %v49
  %v193 = vpop.permute.xlu0 %192
  %194 = vset.pattern.permute.xlu0 0
  %195 = vperm.xlu0 %194, %v50
  %v196 = vpop.permute.xlu0 %195
  %197 = vset.pattern.permute.xlu0 0
  %198 = vperm.xlu0 %197, %v51
  %v199 = vpop.permute.xlu0 %198
  %200 = vset.pattern.permute.xlu0 0
  %201 = vperm.xlu0 %200, %v52
  %v202 = vpop.permute.xlu0 %201
  %203 = vset.pattern.permute.xlu0 0
  %204 = vperm.xlu0 %203, %v53
  %v205 = vpop.permute.xlu0 %204
  %206 = vset.pattern.permute.xlu0 0
  %207 = vperm.xlu0 %206, %v54
  %v208 = vpop.permute.xlu0 %207
  %209 = vset.pattern.permute.xlu0 0
  %210 = vperm.xlu0 %209, %v55
  %v211 = vpop.permute.xlu0 %210
  %212 = vset.pattern.permute.xlu0 0
  %213 = vperm.xlu0 %212, %v56
  %v214 = vpop.permute.xlu0 %213
  %215 = vset.pattern.permute.xlu0 0
  %216 = vperm.xlu0 %215, %v57
  %v217 = vpop.permute.xlu0 %216
  %218 = vset.pattern.permute.xlu0 0
  %219 = vperm.xlu0 %218, %v58
  %v220 = vpop.permute.xlu0 %219
  %221 = vset.pattern.permute.xlu0 0
  %222 = vperm.xlu0 %221, %v59
  %v223 = vpop.permute.xlu0 %222
  %224 = vset.pattern.permute.xlu0 0
  %225 = vperm.xlu0 %224, %v60
  %v226 = vpop.permute.xlu0 %225
  %227 = vset.pattern.permute.xlu0 0
  %228 = vperm.xlu0 %227, %v61
  %v229 = vpop.permute.xlu0 %228
  %230 = vset.pattern.permute.xlu0 0
  %231 = vperm.xlu0 %230, %v62
  %v232 = vpop.permute.xlu0 %231
  %233 = vset.pattern.permute.xlu0 0
  %234 = vperm.xlu0 %233, %v63
  %v235 = vpop.permute.xlu0 %234
  %236 = vset.pattern.permute.xlu0 0
  %237 = vperm.xlu0 %236, %v64
  %v238 = vpop.permute.xlu0 %237
  %239 = vset.pattern.permute.xlu0 0
  %240 = vperm.xlu0 %239, %v65
  %v241 = vpop.permute.xlu0 %240
  %242 = vset.pattern.permute.xlu0 0
  %243 = vperm.xlu0 %242, %v66
  %v244 = vpop.permute.xlu0 %243
  %245 = vset.pattern.permute.xlu0 0
  %246 = vperm.xlu0 %245, %v67
  %v247 = vpop.permute.xlu0 %246
  %248 = vset.pattern.permute.xlu0 0
  %249 = vperm.xlu0 %248, %v68
  %v250 = vpop.permute.xlu0 %249
  %251 = vset.pattern.permute.xlu0 0
  %252 = vperm.xlu0 %251, %v69
  %v253 = vpop.permute.xlu0 %252
  %254 = vset.pattern.permute.xlu0 0
  %255 = vperm.xlu0 %254, %v70
  %v256 = vpop.permute.xlu0 %255
  %257 = vset.pattern.permute.xlu0 0
  %258 = vperm.xlu0 %257, %v71
  %v259 = vpop.permute.xlu0 %258
  %260 = vset.pattern.permute.xlu0 0
  %261 = vperm.xlu0 %260, %v72
  %v262 = vpop.permute.xlu0 %261
  %263 = vset.pattern.permute.xlu0 0
  %264 = vperm.xlu0 %263, %v73
  %v265 = vpop.permute.xlu0 %264
  %266 = vset.pattern.permute.xlu0 0
  %267 = vperm.xlu0 %266, %v74
  %v268 = vpop.permute.xlu0 %267
  %vm269 = vcmp.eq.s32.totalorder %v76, %v79
  %vm270 = vcmp.eq.s32.totalorder %v76, %v82
  %vm271 = vcmp.eq.s32.totalorder %v76, %v85
  %vm272 = vcmp.eq.s32.totalorder %v76, %v88
  %vm273 = vcmp.eq.s32.totalorder %v76, %v91
  %vm274 = vcmp.eq.s32.totalorder %v76, %v94
  %vm275 = vcmp.eq.s32.totalorder %v76, %v97
  %vm276 = vcmp.eq.s32.totalorder %v76, %v100
  %vm277 = vcmp.eq.s32.totalorder %v76, %v103
  %vm278 = vcmp.eq.s32.totalorder %v76, %v106
  %vm279 = vcmp.eq.s32.totalorder %v76, %v109
  %vm280 = vcmp.eq.s32.totalorder %v76, %v112
  %vm281 = vcmp.eq.s32.totalorder %v76, %v115
  %vm282 = vcmp.eq.s32.totalorder %v76, %v118
  %vm283 = vcmp.eq.s32.totalorder %v76, %v121
  %vm284 = vcmp.eq.s32.totalorder %v76, %v124
  %vm285 = vcmp.eq.s32.totalorder %v76, %v127
  %vm286 = vcmp.eq.s32.totalorder %v76, %v130
  %vm287 = vcmp.eq.s32.totalorder %v76, %v133
  %vm288 = vcmp.eq.s32.totalorder %v76, %v136
  %vm289 = vcmp.eq.s32.totalorder %v76, %v139
  %vm290 = vcmp.eq.s32.totalorder %v76, %v142
  %vm291 = vcmp.eq.s32.totalorder %v76, %v145
  %vm292 = vcmp.eq.s32.totalorder %v76, %v148
  %vm293 = vcmp.eq.s32.totalorder %v76, %v151
  %vm294 = vcmp.eq.s32.totalorder %v76, %v154
  %vm295 = vcmp.eq.s32.totalorder %v76, %v157
  %vm296 = vcmp.eq.s32.totalorder %v76, %v160
  %vm297 = vcmp.eq.s32.totalorder %v76, %v163
  %vm298 = vcmp.eq.s32.totalorder %v76, %v166
  %vm299 = vcmp.eq.s32.totalorder %v76, %v169
  %vm300 = vcmp.eq.s32.totalorder %v76, %v172
  %vm301 = vcmp.eq.s32.totalorder %v76, %v175
  %vm302 = vcmp.eq.s32.totalorder %v76, %v178
  %vm303 = vcmp.eq.s32.totalorder %v76, %v181
  %vm304 = vcmp.eq.s32.totalorder %v76, %v184
  %vm305 = vcmp.eq.s32.totalorder %v76, %v187
  %vm306 = vcmp.eq.s32.totalorder %v76, %v190
  %vm307 = vcmp.eq.s32.totalorder %v76, %v193
  %vm308 = vcmp.eq.s32.totalorder %v76, %v196
  %vm309 = vcmp.eq.s32.totalorder %v76, %v199
  %vm310 = vcmp.eq.s32.totalorder %v76, %v202
  %vm311 = vcmp.eq.s32.totalorder %v76, %v205
  %vm312 = vcmp.eq.s32.totalorder %v76, %v208
  %vm313 = vcmp.eq.s32.totalorder %v76, %v211
  %vm314 = vcmp.eq.s32.totalorder %v76, %v214
  %vm315 = vcmp.eq.s32.totalorder %v76, %v217
  %vm316 = vcmp.eq.s32.totalorder %v76, %v220
  %vm317 = vcmp.eq.s32.totalorder %v76, %v223
  %vm318 = vcmp.eq.s32.totalorder %v76, %v226
  %vm319 = vcmp.eq.s32.totalorder %v76, %v229
  %vm320 = vcmp.eq.s32.totalorder %v76, %v232
  %vm321 = vcmp.eq.s32.totalorder %v76, %v235
  %vm322 = vcmp.eq.s32.totalorder %v76, %v238
  %vm323 = vcmp.eq.s32.totalorder %v76, %v241
  %vm324 = vcmp.eq.s32.totalorder %v76, %v244
  %vm325 = vcmp.eq.s32.totalorder %v76, %v247
  %vm326 = vcmp.eq.s32.totalorder %v76, %v250
  %vm327 = vcmp.eq.s32.totalorder %v76, %v253
  %vm328 = vcmp.eq.s32.totalorder %v76, %v256
  %vm329 = vcmp.eq.s32.totalorder %v76, %v259
  %vm330 = vcmp.eq.s32.totalorder %v76, %v262
  %vm331 = vcmp.eq.s32.totalorder %v76, %v265
  %vm332 = vcmp.eq.s32.totalorder %v76, %v268
  %v333 = vsel %vm269, 1, 0
  %v334 = vsel %vm270, 1, 0
  %v335 = vsel %vm271, 1, 0
  %v336 = vsel %vm272, 1, 0
  %v337 = vsel %vm273, 1, 0
  %v338 = vsel %vm274, 1, 0
  %v339 = vsel %vm275, 1, 0
  %v340 = vsel %vm276, 1, 0
  %v341 = vsel %vm277, 1, 0
  %v342 = vsel %vm278, 1, 0
  %v343 = vsel %vm279, 1, 0
  %v344 = vsel %vm280, 1, 0
  %v345 = vsel %vm281, 1, 0
  %v346 = vsel %vm282, 1, 0
  %v347 = vsel %vm283, 1, 0
  %v348 = vsel %vm284, 1, 0
  %v349 = vsel %vm285, 1, 0
  %v350 = vsel %vm286, 1, 0
  %v351 = vsel %vm287, 1, 0
  %v352 = vsel %vm288, 1, 0
  %v353 = vsel %vm289, 1, 0
  %v354 = vsel %vm290, 1, 0
  %v355 = vsel %vm291, 1, 0
  %v356 = vsel %vm292, 1, 0
  %v357 = vsel %vm293, 1, 0
  %v358 = vsel %vm294, 1, 0
  %v359 = vsel %vm295, 1, 0
  %v360 = vsel %vm296, 1, 0
  %v361 = vsel %vm297, 1, 0
  %v362 = vsel %vm298, 1, 0
  %v363 = vsel %vm299, 1, 0
  %v364 = vsel %vm300, 1, 0
  %v365 = vsel %vm301, 1, 0
  %v366 = vsel %vm302, 1, 0
  %v367 = vsel %vm303, 1, 0
  %v368 = vsel %vm304, 1, 0
  %v369 = vsel %vm305, 1, 0
  %v370 = vsel %vm306, 1, 0
  %v371 = vsel %vm307, 1, 0
  %v372 = vsel %vm308, 1, 0
  %v373 = vsel %vm309, 1, 0
  %v374 = vsel %vm310, 1, 0
  %v375 = vsel %vm311, 1, 0
  %v376 = vsel %vm312, 1, 0
  %v377 = vsel %vm313, 1, 0
  %v378 = vsel %vm314, 1, 0
  %v379 = vsel %vm315, 1, 0
  %v380 = vsel %vm316, 1, 0
  %v381 = vsel %vm317, 1, 0
  %v382 = vsel %vm318, 1, 0
  %v383 = vsel %vm319, 1, 0
  %v384 = vsel %vm320, 1, 0
  %v385 = vsel %vm321, 1, 0
  %v386 = vsel %vm322, 1, 0
  %v387 = vsel %vm323, 1, 0
  %v388 = vsel %vm324, 1, 0
  %v389 = vsel %vm325, 1, 0
  %v390 = vsel %vm326, 1, 0
  %v391 = vsel %vm327, 1, 0
  %v392 = vsel %vm328, 1, 0
  %v393 = vsel %vm329, 1, 0
  %v394 = vsel %vm330, 1, 0
  %v395 = vsel %vm331, 1, 0
  %v396 = vsel %vm332, 1, 0
  %v397 = vcvt.s32.f32 %v333
  %v398 = vcvt.s32.f32 %v334
  %v399 = vcvt.s32.f32 %v335
  %v400 = vcvt.s32.f32 %v336
  %v401 = vcvt.s32.f32 %v337
  %v402 = vcvt.s32.f32 %v338
  %v403 = vcvt.s32.f32 %v339
  %v404 = vcvt.s32.f32 %v340
  %v405 = vcvt.s32.f32 %v341
  %v406 = vcvt.s32.f32 %v342
  %v407 = vcvt.s32.f32 %v343
  %v408 = vcvt.s32.f32 %v344
  %v409 = vcvt.s32.f32 %v345
  %v410 = vcvt.s32.f32 %v346
  %v411 = vcvt.s32.f32 %v347
  %v412 = vcvt.s32.f32 %v348
  %v413 = vcvt.s32.f32 %v349
  %v414 = vcvt.s32.f32 %v350
  %v415 = vcvt.s32.f32 %v351
  %v416 = vcvt.s32.f32 %v352
  %v417 = vcvt.s32.f32 %v353
  %v418 = vcvt.s32.f32 %v354
  %v419 = vcvt.s32.f32 %v355
  %v420 = vcvt.s32.f32 %v356
  %v421 = vcvt.s32.f32 %v357
  %v422 = vcvt.s32.f32 %v358
  %v423 = vcvt.s32.f32 %v359
  %v424 = vcvt.s32.f32 %v360
  %v425 = vcvt.s32.f32 %v361
  %v426 = vcvt.s32.f32 %v362
  %v427 = vcvt.s32.f32 %v363
  %v428 = vcvt.s32.f32 %v364
  %v429 = vcvt.s32.f32 %v365
  %v430 = vcvt.s32.f32 %v366
  %v431 = vcvt.s32.f32 %v367
  %v432 = vcvt.s32.f32 %v368
  %v433 = vcvt.s32.f32 %v369
  %v434 = vcvt.s32.f32 %v370
  %v435 = vcvt.s32.f32 %v371
  %v436 = vcvt.s32.f32 %v372
  %v437 = vcvt.s32.f32 %v373
  %v438 = vcvt.s32.f32 %v374
  %v439 = vcvt.s32.f32 %v375
  %v440 = vcvt.s32.f32 %v376
  %v441 = vcvt.s32.f32 %v377
  %v442 = vcvt.s32.f32 %v378
  %v443 = vcvt.s32.f32 %v379
  %v444 = vcvt.s32.f32 %v380
  %v445 = vcvt.s32.f32 %v381
  %v446 = vcvt.s32.f32 %v382
  %v447 = vcvt.s32.f32 %v383
  %v448 = vcvt.s32.f32 %v384
  %v449 = vcvt.s32.f32 %v385
  %v450 = vcvt.s32.f32 %v386
  %v451 = vcvt.s32.f32 %v387
  %v452 = vcvt.s32.f32 %v388
  %v453 = vcvt.s32.f32 %v389
  %v454 = vcvt.s32.f32 %v390
  %v455 = vcvt.s32.f32 %v391
  %v456 = vcvt.s32.f32 %v392
  %v457 = vcvt.s32.f32 %v393
  %v458 = vcvt.s32.f32 %v394
  %v459 = vcvt.s32.f32 %v395
  %v460 = vcvt.s32.f32 %v396
  %v461 = vld [vmem:[%s1] sm:$0xff]
  %v462 = vld [vmem:[%s1 + $0x8] sm:$0xff]
  %v463 = vld [vmem:[%s1 + $0x10] sm:$0xff]
  %v464 = vld [vmem:[%s1 + $0x18] sm:$0xff]
  %v465 = vld [vmem:[%s1 + $0x20] sm:$0xff]
  %v466 = vld [vmem:[%s1 + $0x28] sm:$0xff]
  %v467 = vld [vmem:[%s1 + $0x30] sm:$0xff]
  %v468 = vld [vmem:[%s1 + $0x38] sm:$0xff]
  %v469 = vld [vmem:[%s1 + $0x40] sm:$0xff]
  %v470 = vld [vmem:[%s1 + $0x48] sm:$0xff]
  %v471 = vld [vmem:[%s1 + $0x50] sm:$0xff]
  %v472 = vld [vmem:[%s1 + $0x58] sm:$0xff]
  %v473 = vld [vmem:[%s1 + $0x60] sm:$0xff]
  %v474 = vld [vmem:[%s1 + $0x68] sm:$0xff]
  %v475 = vld [vmem:[%s1 + $0x70] sm:$0xff]
  %v476 = vld [vmem:[%s1 + $0x78] sm:$0xff]
  %477 = vmatprep.subr.mxu0 0.0
  %478 = vmatpush1.msra.mxu0 %v461
  %479 = vmatprep.subr.mxu0 0.0
  %480 = vmatpush1.msra.mxu0 %v462
  %481 = vmatprep.subr.mxu0 0.0
  %482 = vmatpush1.msra.mxu0 %v463
  %483 = vmatprep.subr.mxu0 0.0
  %484 = vmatpush1.msra.mxu0 %v464
  %485 = vmatprep.subr.mxu0 0.0
  %486 = vmatpush1.msra.mxu0 %v465
  %487 = vmatprep.subr.mxu0 0.0
  %488 = vmatpush1.msra.mxu0 %v466
  %489 = vmatprep.subr.mxu0 0.0
  %490 = vmatpush1.msra.mxu0 %v467
  %491 = vmatprep.subr.mxu0 0.0
  %492 = vmatpush1.msra.mxu0 %v468
  %493 = vmatprep.subr.mxu0 0.0
  %494 = vmatpush1.msra.mxu0 %v469
  %495 = vmatprep.subr.mxu0 0.0
  %496 = vmatpush1.msra.mxu0 %v470
  %497 = vmatprep.subr.mxu0 0.0
  %498 = vmatpush1.msra.mxu0 %v471
  %499 = vmatprep.subr.mxu0 0.0
  %500 = vmatpush1.msra.mxu0 %v472
  %501 = vmatprep.subr.mxu0 0.0
  %502 = vmatpush1.msra.mxu0 %v473
  %503 = vmatprep.subr.mxu0 0.0
  %504 = vmatpush1.msra.mxu0 %v474
  %505 = vmatprep.subr.mxu0 0.0
  %506 = vmatpush1.msra.mxu0 %v475
  %507 = vmatprep.subr.mxu0 0.0
  %508 = vmatpush1.msra.mxu0 %v476
  %509 = vmatprep.subr.mxu0 0.0
  %510 = vmatpush1.msra.mxu0 0.0
  %511 = vmatprep.subr.mxu0 0.0
  %512 = vmatpush1.msra.mxu0 0.0
  %513 = vmatprep.subr.mxu0 0.0
  %514 = vmatpush1.msra.mxu0 0.0
  %515 = vmatprep.subr.mxu0 0.0
  %516 = vmatpush1.msra.mxu0 0.0
  %517 = vmatprep.subr.mxu0 0.0
  %518 = vmatpush1.msra.mxu0 0.0
  %519 = vmatprep.subr.mxu0 0.0
  %520 = vmatpush1.msra.mxu0 0.0
  %521 = vmatprep.subr.mxu0 0.0
  %522 = vmatpush1.msra.mxu0 0.0
  %523 = vmatprep.subr.mxu0 0.0
  %524 = vmatpush1.msra.mxu0 0.0
  %525 = vmatprep.subr.mxu0 0.0
  %526 = vmatpush1.msra.mxu0 0.0
  %527 = vmatprep.subr.mxu0 0.0
  %528 = vmatpush1.msra.mxu0 0.0
  %529 = vmatprep.subr.mxu0 0.0
  %530 = vmatpush1.msra.mxu0 0.0
  %531 = vmatprep.subr.mxu0 0.0
  %532 = vmatpush1.msra.mxu0 0.0
  %533 = vmatprep.subr.mxu0 0.0
  %534 = vmatpush1.msra.mxu0 0.0
  %535 = vmatprep.subr.mxu0 0.0
  %536 = vmatpush1.msra.mxu0 0.0
  %537 = vmatprep.subr.mxu0 0.0
  %538 = vmatpush1.msra.mxu0 0.0
  %539 = vmatprep.subr.mxu0 0.0
  %540 = vmatpush1.msra.mxu0 0.0
  %541 = vmatprep.mubr.f32.mxu0 0.0
  %542 = vmatmul.mubr.f32.gmra.mrb[0].mxu0 %v397
  %v543 = vpop.f32.mrb[0].mxu0
  %v544 = vadd.f32 0.0, %v543
  %v545 = vpop.f32.mrb[0].mxu0
  %546 = vmatprep.mubr.f32.mxu0 0.0
  %547 = vmatmul.mubr.f32.gmra.mrb[0].mxu0 %v398
  %v548 = vpop.f32.mrb[0].mxu0
  %v549 = vadd.f32 0.0, %v548
  %v550 = vpop.f32.mrb[0].mxu0
  %551 = vmatprep.mubr.f32.mxu0 0.0
  %552 = vmatmul.mubr.f32.gmra.mrb[0].mxu0 %v399
  %v553 = vpop.f32.mrb[0].mxu0
  %v554 = vadd.f32 0.0, %v553
  %v555 = vpop.f32.mrb[0].mxu0
  %556 = vmatprep.mubr.f32.mxu0 0.0
  %557 = vmatmul.mubr.f32.gmra.mrb[0].mxu0 %v400
  %v558 = vpop.f32.mrb[0].mxu0
  %v559 = vadd.f32 0.0, %v558
  %v560 = vpop.f32.mrb[0].mxu0
  %561 = vmatprep.mubr.f32.mxu0 0.0
  %562 = vmatmul.mubr.f32.gmra.mrb[0].mxu0 %v401
  %v563 = vpop.f32.mrb[0].mxu0
  %v564 = vadd.f32 0.0, %v563
  %v565 = vpop.f32.mrb[0].mxu0
  %566 = vmatprep.mubr.f32.mxu0 0.0
  %567 = vmatmul.mubr.f32.gmra.mrb[0].mxu0 %v402
  %v568 = vpop.f32.mrb[0].mxu0
  %v569 = vadd.f32 0.0, %v568
  %v570 = vpop.f32.mrb[0].mxu0
  %571 = vmatprep.mubr.f32.mxu0 0.0
  %572 = vmatmul.mubr.f32.gmra.mrb[0].mxu0 %v403
  %v573 = vpop.f32.mrb[0].mxu0
  %v574 = vadd.f32 0.0, %v573
  %v575 = vpop.f32.mrb[0].mxu0
  %576 = vmatprep.mubr.f32.mxu0 0.0
  %577 = vmatmul.mubr.f32.gmra.mrb[0].mxu0 %v404
  %v578 = vpop.f32.mrb[0].mxu0
  %v579 = vadd.f32 0.0, %v578
  %v580 = vpop.f32.mrb[0].mxu0
  %581 = vmatprep.mubr.f32.mxu0 0.0
  %582 = vmatmul.mubr.f32.gmra.mrb[0].mxu0 %v405
  %v583 = vpop.f32.mrb[0].mxu0
  %v584 = vadd.f32 0.0, %v583
  %v585 = vpop.f32.mrb[0].mxu0
  %586 = vmatprep.mubr.f32.mxu0 0.0
  %587 = vmatmul.mubr.f32.gmra.mrb[0].mxu0 %v406
  %v588 = vpop.f32.mrb[0].mxu0
  %v589 = vadd.f32 0.0, %v588
  %v590 = vpop.f32.mrb[0].mxu0
  %591 = vmatprep.mubr.f32.mxu0 0.0
  %592 = vmatmul.mubr.f32.gmra.mrb[0].mxu0 %v407
  %v593 = vpop.f32.mrb[0].mxu0
  %v594 = vadd.f32 0.0, %v593
  %v595 = vpop.f32.mrb[0].mxu0
  %596 = vmatprep.mubr.f32.mxu0 0.0
  %597 = vmatmul.mubr.f32.gmra.mrb[0].mxu0 %v408
  %v598 = vpop.f32.mrb[0].mxu0
  %v599 = vadd.f32 0.0, %v598
  %v600 = vpop.f32.mrb[0].mxu0
  %601 = vmatprep.mubr.f32.mxu0 0.0
  %602 = vmatmul.mubr.f32.gmra.mrb[0].mxu0 %v409
  %v603 = vpop.f32.mrb[0].mxu0
  %v604 = vadd.f32 0.0, %v603
  %v605 = vpop.f32.mrb[0].mxu0
  %606 = vmatprep.mubr.f32.mxu0 0.0
  %607 = vmatmul.mubr.f32.gmra.mrb[0].mxu0 %v410
  %v608 = vpop.f32.mrb[0].mxu0
  %v609 = vadd.f32 0.0, %v608
  %v610 = vpop.f32.mrb[0].mxu0
  %611 = vmatprep.mubr.f32.mxu0 0.0
  %612 = vmatmul.mubr.f32.gmra.mrb[0].mxu0 %v411
  %v613 = vpop.f32.mrb[0].mxu0
  %v614 = vadd.f32 0.0, %v613
  %v615 = vpop.f32.mrb[0].mxu0
  %616 = vmatprep.mubr.f32.mxu0 0.0
  %617 = vmatmul.mubr.f32.gmra.mrb[0].mxu0 %v412
  %v618 = vpop.f32.mrb[0].mxu0
  %v619 = vadd.f32 0.0, %v618
  %v620 = vpop.f32.mrb[0].mxu0
  %621 = vmatprep.mubr.f32.mxu0 0.0
  %622 = vmatmul.mubr.f32.gmra.mrb[0].mxu0 %v413
  %v623 = vpop.f32.mrb[0].mxu0
  %v624 = vadd.f32 0.0, %v623
  %v625 = vpop.f32.mrb[0].mxu0
  %626 = vmatprep.mubr.f32.mxu0 0.0
  %627 = vmatmul.mubr.f32.gmra.mrb[0].mxu0 %v414
  %v628 = vpop.f32.mrb[0].mxu0
  %v629 = vadd.f32 0.0, %v628
  %v630 = vpop.f32.mrb[0].mxu0
  %631 = vmatprep.mubr.f32.mxu0 0.0
  %632 = vmatmul.mubr.f32.gmra.mrb[0].mxu0 %v415
  %v633 = vpop.f32.mrb[0].mxu0
  %v634 = vadd.f32 0.0, %v633
  %v635 = vpop.f32.mrb[0].mxu0
  %636 = vmatprep.mubr.f32.mxu0 0.0
  %637 = vmatmul.mubr.f32.gmra.mrb[0].mxu0 %v416
  %v638 = vpop.f32.mrb[0].mxu0
  %v639 = vadd.f32 0.0, %v638
  %v640 = vpop.f32.mrb[0].mxu0
  %641 = vmatprep.mubr.f32.mxu0 0.0
  %642 = vmatmul.mubr.f32.gmra.mrb[0].mxu0 %v417
  %v643 = vpop.f32.mrb[0].mxu0
  %v644 = vadd.f32 0.0, %v643
  %v645 = vpop.f32.mrb[0].mxu0
  %646 = vmatprep.mubr.f32.mxu0 0.0
  %647 = vmatmul.mubr.f32.gmra.mrb[0].mxu0 %v418
  %v648 = vpop.f32.mrb[0].mxu0
  %v649 = vadd.f32 0.0, %v648
  %v650 = vpop.f32.mrb[0].mxu0
  %651 = vmatprep.mubr.f32.mxu0 0.0
  %652 = vmatmul.mubr.f32.gmra.mrb[0].mxu0 %v419
  %v653 = vpop.f32.mrb[0].mxu0
  %v654 = vadd.f32 0.0, %v653
  %v655 = vpop.f32.mrb[0].mxu0
  %656 = vmatprep.mubr.f32.mxu0 0.0
  %657 = vmatmul.mubr.f32.gmra.mrb[0].mxu0 %v420
  %v658 = vpop.f32.mrb[0].mxu0
  %v659 = vadd.f32 0.0, %v658
  %v660 = vpop.f32.mrb[0].mxu0
  %661 = vmatprep.mubr.f32.mxu0 0.0
  %662 = vmatmul.mubr.f32.gmra.mrb[0].mxu0 %v421
  %v663 = vpop.f32.mrb[0].mxu0
  %v664 = vadd.f32 0.0, %v663
  %v665 = vpop.f32.mrb[0].mxu0
  %666 = vmatprep.mubr.f32.mxu0 0.0
  %667 = vmatmul.mubr.f32.gmra.mrb[0].mxu0 %v422
  %v668 = vpop.f32.mrb[0].mxu0
  %v669 = vadd.f32 0.0, %v668
  %v670 = vpop.f32.mrb[0].mxu0
  %671 = vmatprep.mubr.f32.mxu0 0.0
  %672 = vmatmul.mubr.f32.gmra.mrb[0].mxu0 %v423
  %v673 = vpop.f32.mrb[0].mxu0
  %v674 = vadd.f32 0.0, %v673
  %v675 = vpop.f32.mrb[0].mxu0
  %676 = vmatprep.mubr.f32.mxu0 0.0
  %677 = vmatmul.mubr.f32.gmra.mrb[0].mxu0 %v424
  %v678 = vpop.f32.mrb[0].mxu0
  %v679 = vadd.f32 0.0, %v678
  %v680 = vpop.f32.mrb[0].mxu0
  %681 = vmatprep.mubr.f32.mxu0 0.0
  %682 = vmatmul.mubr.f32.gmra.mrb[0].mxu0 %v425
  %v683 = vpop.f32.mrb[0].mxu0
  %v684 = vadd.f32 0.0, %v683
  %v685 = vpop.f32.mrb[0].mxu0
  %686 = vmatprep.mubr.f32.mxu0 0.0
  %687 = vmatmul.mubr.f32.gmra.mrb[0].mxu0 %v426
  %v688 = vpop.f32.mrb[0].mxu0
  %v689 = vadd.f32 0.0, %v688
  %v690 = vpop.f32.mrb[0].mxu0
  %691 = vmatprep.mubr.f32.mxu0 0.0
  %692 = vmatmul.mubr.f32.gmra.mrb[0].mxu0 %v427
  %v693 = vpop.f32.mrb[0].mxu0
  %v694 = vadd.f32 0.0, %v693
  %v695 = vpop.f32.mrb[0].mxu0
  %696 = vmatprep.mubr.f32.mxu0 0.0
  %697 = vmatmul.mubr.f32.gmra.mrb[0].mxu0 %v428
  %v698 = vpop.f32.mrb[0].mxu0
  %v699 = vadd.f32 0.0, %v698
  %v700 = vpop.f32.mrb[0].mxu0
  %701 = vmatprep.mubr.f32.mxu0 0.0
  %702 = vmatmul.mubr.f32.gmra.mrb[0].mxu0 %v429
  %v703 = vpop.f32.mrb[0].mxu0
  %v704 = vadd.f32 0.0, %v703
  %v705 = vpop.f32.mrb[0].mxu0
  %706 = vmatprep.mubr.f32.mxu0 0.0
  %707 = vmatmul.mubr.f32.gmra.mrb[0].mxu0 %v430
  %v708 = vpop.f32.mrb[0].mxu0
  %v709 = vadd.f32 0.0, %v708
  %v710 = vpop.f32.mrb[0].mxu0
  %711 = vmatprep.mubr.f32.mxu0 0.0
  %712 = vmatmul.mubr.f32.gmra.mrb[0].mxu0 %v431
  %v713 = vpop.f32.mrb[0].mxu0
  %v714 = vadd.f32 0.0, %v713
  %v715 = vpop.f32.mrb[0].mxu0
  %716 = vmatprep.mubr.f32.mxu0 0.0
  %717 = vmatmul.mubr.f32.gmra.mrb[0].mxu0 %v432
  %v718 = vpop.f32.mrb[0].mxu0
  %v719 = vadd.f32 0.0, %v718
  %v720 = vpop.f32.mrb[0].mxu0
  %721 = vmatprep.mubr.f32.mxu0 0.0
  %722 = vmatmul.mubr.f32.gmra.mrb[0].mxu0 %v433
  %v723 = vpop.f32.mrb[0].mxu0
  %v724 = vadd.f32 0.0, %v723
  %v725 = vpop.f32.mrb[0].mxu0
  %726 = vmatprep.mubr.f32.mxu0 0.0
  %727 = vmatmul.mubr.f32.gmra.mrb[0].mxu0 %v434
  %v728 = vpop.f32.mrb[0].mxu0
  %v729 = vadd.f32 0.0, %v728
  %v730 = vpop.f32.mrb[0].mxu0
  %731 = vmatprep.mubr.f32.mxu0 0.0
  %732 = vmatmul.mubr.f32.gmra.mrb[0].mxu0 %v435
  %v733 = vpop.f32.mrb[0].mxu0
  %v734 = vadd.f32 0.0, %v733
  %v735 = vpop.f32.mrb[0].mxu0
  %736 = vmatprep.mubr.f32.mxu0 0.0
  %737 = vmatmul.mubr.f32.gmra.mrb[0].mxu0 %v436
  %v738 = vpop.f32.mrb[0].mxu0
  %v739 = vadd.f32 0.0, %v738
  %v740 = vpop.f32.mrb[0].mxu0
  %741 = vmatprep.mubr.f32.mxu0 0.0
  %742 = vmatmul.mubr.f32.gmra.mrb[0].mxu0 %v437
  %v743 = vpop.f32.mrb[0].mxu0
  %v744 = vadd.f32 0.0, %v743
  %v745 = vpop.f32.mrb[0].mxu0
  %746 = vmatprep.mubr.f32.mxu0 0.0
  %747 = vmatmul.mubr.f32.gmra.mrb[0].mxu0 %v438
  %v748 = vpop.f32.mrb[0].mxu0
  %v749 = vadd.f32 0.0, %v748
  %v750 = vpop.f32.mrb[0].mxu0
  %751 = vmatprep.mubr.f32.mxu0 0.0
  %752 = vmatmul.mubr.f32.gmra.mrb[0].mxu0 %v439
  %v753 = vpop.f32.mrb[0].mxu0
  %v754 = vadd.f32 0.0, %v753
  %v755 = vpop.f32.mrb[0].mxu0
  %756 = vmatprep.mubr.f32.mxu0 0.0
  %757 = vmatmul.mubr.f32.gmra.mrb[0].mxu0 %v440
  %v758 = vpop.f32.mrb[0].mxu0
  %v759 = vadd.f32 0.0, %v758
  %v760 = vpop.f32.mrb[0].mxu0
  %761 = vmatprep.mubr.f32.mxu0 0.0
  %762 = vmatmul.mubr.f32.gmra.mrb[0].mxu0 %v441
  %v763 = vpop.f32.mrb[0].mxu0
  %v764 = vadd.f32 0.0, %v763
  %v765 = vpop.f32.mrb[0].mxu0
  %766 = vmatprep.mubr.f32.mxu0 0.0
  %767 = vmatmul.mubr.f32.gmra.mrb[0].mxu0 %v442
  %v768 = vpop.f32.mrb[0].mxu0
  %v769 = vadd.f32 0.0, %v768
  %v770 = vpop.f32.mrb[0].mxu0
  %771 = vmatprep.mubr.f32.mxu0 0.0
  %772 = vmatmul.mubr.f32.gmra.mrb[0].mxu0 %v443
  %v773 = vpop.f32.mrb[0].mxu0
  %v774 = vadd.f32 0.0, %v773
  %v775 = vpop.f32.mrb[0].mxu0
  %776 = vmatprep.mubr.f32.mxu0 0.0
  %777 = vmatmul.mubr.f32.gmra.mrb[0].mxu0 %v444
  %v778 = vpop.f32.mrb[0].mxu0
  %v779 = vadd.f32 0.0, %v778
  %v780 = vpop.f32.mrb[0].mxu0
  %781 = vmatprep.mubr.f32.mxu0 0.0
  %782 = vmatmul.mubr.f32.gmra.mrb[0].mxu0 %v445
  %v783 = vpop.f32.mrb[0].mxu0
  %v784 = vadd.f32 0.0, %v783
  %v785 = vpop.f32.mrb[0].mxu0
  %786 = vmatprep.mubr.f32.mxu0 0.0
  %787 = vmatmul.mubr.f32.gmra.mrb[0].mxu0 %v446
  %v788 = vpop.f32.mrb[0].mxu0
  %v789 = vadd.f32 0.0, %v788
  %v790 = vpop.f32.mrb[0].mxu0
  %791 = vmatprep.mubr.f32.mxu0 0.0
  %792 = vmatmul.mubr.f32.gmra.mrb[0].mxu0 %v447
  %v793 = vpop.f32.mrb[0].mxu0
  %v794 = vadd.f32 0.0, %v793
  %v795 = vpop.f32.mrb[0].mxu0
  %796 = vmatprep.mubr.f32.mxu0 0.0
  %797 = vmatmul.mubr.f32.gmra.mrb[0].mxu0 %v448
  %v798 = vpop.f32.mrb[0].mxu0
  %v799 = vadd.f32 0.0, %v798
  %v800 = vpop.f32.mrb[0].mxu0
  %801 = vmatprep.mubr.f32.mxu0 0.0
  %802 = vmatmul.mubr.f32.gmra.mrb[0].mxu0 %v449
  %v803 = vpop.f32.mrb[0].mxu0
  %v804 = vadd.f32 0.0, %v803
  %v805 = vpop.f32.mrb[0].mxu0
  %806 = vmatprep.mubr.f32.mxu0 0.0
  %807 = vmatmul.mubr.f32.gmra.mrb[0].mxu0 %v450
  %v808 = vpop.f32.mrb[0].mxu0
  %v809 = vadd.f32 0.0, %v808
  %v810 = vpop.f32.mrb[0].mxu0
  %811 = vmatprep.mubr.f32.mxu0 0.0
  %812 = vmatmul.mubr.f32.gmra.mrb[0].mxu0 %v451
  %v813 = vpop.f32.mrb[0].mxu0
  %v814 = vadd.f32 0.0, %v813
  %v815 = vpop.f32.mrb[0].mxu0
  %816 = vmatprep.mubr.f32.mxu0 0.0
  %817 = vmatmul.mubr.f32.gmra.mrb[0].mxu0 %v452
  %v818 = vpop.f32.mrb[0].mxu0
  %v819 = vadd.f32 0.0, %v818
  %v820 = vpop.f32.mrb[0].mxu0
  %821 = vmatprep.mubr.f32.mxu0 0.0
  %822 = vmatmul.mubr.f32.gmra.mrb[0].mxu0 %v453
  %v823 = vpop.f32.mrb[0].mxu0
  %v824 = vadd.f32 0.0, %v823
  %v825 = vpop.f32.mrb[0].mxu0
  %826 = vmatprep.mubr.f32.mxu0 0.0
  %827 = vmatmul.mubr.f32.gmra.mrb[0].mxu0 %v454
  %v828 = vpop.f32.mrb[0].mxu0
  %v829 = vadd.f32 0.0, %v828
  %v830 = vpop.f32.mrb[0].mxu0
  %831 = vmatprep.mubr.f32.mxu0 0.0
  %832 = vmatmul.mubr.f32.gmra.mrb[0].mxu0 %v455
  %v833 = vpop.f32.mrb[0].mxu0
  %v834 = vadd.f32 0.0, %v833
  %v835 = vpop.f32.mrb[0].mxu0
  %836 = vmatprep.mubr.f32.mxu0 0.0
  %837 = vmatmul.mubr.f32.gmra.mrb[0].mxu0 %v456
  %v838 = vpop.f32.mrb[0].mxu0
  %v839 = vadd.f32 0.0, %v838
  %v840 = vpop.f32.mrb[0].mxu0
  %841 = vmatprep.mubr.f32.mxu0 0.0
  %842 = vmatmul.mubr.f32.gmra.mrb[0].mxu0 %v457
  %v843 = vpop.f32.mrb[0].mxu0
  %v844 = vadd.f32 0.0, %v843
  %v845 = vpop.f32.mrb[0].mxu0
  %846 = vmatprep.mubr.f32.mxu0 0.0
  %847 = vmatmul.mubr.f32.gmra.mrb[0].mxu0 %v458
  %v848 = vpop.f32.mrb[0].mxu0
  %v849 = vadd.f32 0.0, %v848
  %v850 = vpop.f32.mrb[0].mxu0
  %851 = vmatprep.mubr.f32.mxu0 0.0
  %852 = vmatmul.mubr.f32.gmra.mrb[0].mxu0 %v459
  %v853 = vpop.f32.mrb[0].mxu0
  %v854 = vadd.f32 0.0, %v853
  %v855 = vpop.f32.mrb[0].mxu0
  %856 = vmatprep.mubr.f32.mxu0 0.0
  %857 = vmatmul.mubr.f32.gmra.mrb[0].mxu0 %v460
  %v858 = vpop.f32.mrb[0].mxu0
  %v859 = vadd.f32 0.0, %v858
  %v860 = vpop.f32.mrb[0].mxu0
  %861 = vdwg.mxu0
  %862 = vst [vmem:[%s2] sm:$0xff] %v544
  %863 = vst [vmem:[%s2 + $0x8] sm:$0xff] %v549
  %864 = vst [vmem:[%s2 + $0x10] sm:$0xff] %v554
  %865 = vst [vmem:[%s2 + $0x18] sm:$0xff] %v559
  %866 = vst [vmem:[%s2 + $0x20] sm:$0xff] %v564
  %867 = vst [vmem:[%s2 + $0x28] sm:$0xff] %v569
  %868 = vst [vmem:[%s2 + $0x30] sm:$0xff] %v574
  %869 = vst [vmem:[%s2 + $0x38] sm:$0xff] %v579
  %870 = vst [vmem:[%s2 + $0x40] sm:$0xff] %v584
  %871 = vst [vmem:[%s2 + $0x48] sm:$0xff] %v589
  %872 = vst [vmem:[%s2 + $0x50] sm:$0xff] %v594
  %873 = vst [vmem:[%s2 + $0x58] sm:$0xff] %v599
  %874 = vst [vmem:[%s2 + $0x60] sm:$0xff] %v604
  %875 = vst [vmem:[%s2 + $0x68] sm:$0xff] %v609
  %876 = vst [vmem:[%s2 + $0x70] sm:$0xff] %v614
  %877 = vst [vmem:[%s2 + $0x78] sm:$0xff] %v619
  %878 = vst [vmem:[%s2 + $0x80] sm:$0xff] %v624
  %879 = vst [vmem:[%s2 + $0x88] sm:$0xff] %v629
  %880 = vst [vmem:[%s2 + $0x90] sm:$0xff] %v634
  %881 = vst [vmem:[%s2 + $0x98] sm:$0xff] %v639
  %882 = vst [vmem:[%s2 + $0xa0] sm:$0xff] %v644
  %883 = vst [vmem:[%s2 + $0xa8] sm:$0xff] %v649
  %884 = vst [vmem:[%s2 + $0xb0] sm:$0xff] %v654
  %885 = vst [vmem:[%s2 + $0xb8] sm:$0xff] %v659
  %886 = vst [vmem:[%s2 + $0xc0] sm:$0xff] %v664
  %887 = vst [vmem:[%s2 + $0xc8] sm:$0xff] %v669
  %888 = vst [vmem:[%s2 + $0xd0] sm:$0xff] %v674
  %889 = vst [vmem:[%s2 + $0xd8] sm:$0xff] %v679
  %890 = vst [vmem:[%s2 + $0xe0] sm:$0xff] %v684
  %891 = vst [vmem:[%s2 + $0xe8] sm:$0xff] %v689
  %892 = vst [vmem:[%s2 + $0xf0] sm:$0xff] %v694
  %893 = vst [vmem:[%s2 + $0xf8] sm:$0xff] %v699
  %894 = vst [vmem:[%s2 + $0x100] sm:$0xff] %v704
  %895 = vst [vmem:[%s2 + $0x108] sm:$0xff] %v709
  %896 = vst [vmem:[%s2 + $0x110] sm:$0xff] %v714
  %897 = vst [vmem:[%s2 + $0x118] sm:$0xff] %v719
  %898 = vst [vmem:[%s2 + $0x120] sm:$0xff] %v724
  %899 = vst [vmem:[%s2 + $0x128] sm:$0xff] %v729
  %900 = vst [vmem:[%s2 + $0x130] sm:$0xff] %v734
  %901 = vst [vmem:[%s2 + $0x138] sm:$0xff] %v739
  %902 = vst [vmem:[%s2 + $0x140] sm:$0xff] %v744
  %903 = vst [vmem:[%s2 + $0x148] sm:$0xff] %v749
  %904 = vst [vmem:[%s2 + $0x150] sm:$0xff] %v754
  %905 = vst [vmem:[%s2 + $0x158] sm:$0xff] %v759
  %906 = vst [vmem:[%s2 + $0x160] sm:$0xff] %v764
  %907 = vst [vmem:[%s2 + $0x168] sm:$0xff] %v769
  %908 = vst [vmem:[%s2 + $0x170] sm:$0xff] %v774
  %909 = vst [vmem:[%s2 + $0x178] sm:$0xff] %v779
  %910 = vst [vmem:[%s2 + $0x180] sm:$0xff] %v784
  %911 = vst [vmem:[%s2 + $0x188] sm:$0xff] %v789
  %912 = vst [vmem:[%s2 + $0x190] sm:$0xff] %v794
  %913 = vst [vmem:[%s2 + $0x198] sm:$0xff] %v799
  %914 = vst [vmem:[%s2 + $0x1a0] sm:$0xff] %v804
  %915 = vst [vmem:[%s2 + $0x1a8] sm:$0xff] %v809
  %916 = vst [vmem:[%s2 + $0x1b0] sm:$0xff] %v814
  %917 = vst [vmem:[%s2 + $0x1b8] sm:$0xff] %v819
  %918 = vst [vmem:[%s2 + $0x1c0] sm:$0xff] %v824
  %919 = vst [vmem:[%s2 + $0x1c8] sm:$0xff] %v829
  %920 = vst [vmem:[%s2 + $0x1d0] sm:$0xff] %v834
  %921 = vst [vmem:[%s2 + $0x1d8] sm:$0xff] %v839
  %922 = vst [vmem:[%s2 + $0x1e0] sm:$0xff] %v844
  %923 = vst [vmem:[%s2 + $0x1e8] sm:$0xff] %v849
  %924 = vst [vmem:[%s2 + $0x1f0] sm:$0xff] %v854
  %925 = vst [vmem:[%s2 + $0x1f8] sm:$0xff] %v859
  // Predicated region
  $region10: #{embedding_forward.1} parent=0 // pred_check
    _
  $region11: #{embedding_forward.1} parent=0 // pred_check_branch
    %927 = sbr.rel (0) target = $region13
  $region12: #{embedding_forward.1} parent=0 // pred_region
    _
  $region13: #{embedding_forward.1} parent=0 // pred_fallthru
    _
  // Predicated region
  $region14: #{embedding_forward.1} parent=0 // pred_check
    _
  $region15: #{embedding_forward.1} parent=0 // pred_check_branch
    %929 = sbr.rel (0) target = $region17
  $region16: #{embedding_forward.1} parent=0 // pred_region
    _
  $region17: #{embedding_forward.1} parent=0 // pred_fallthru
    _

</llo_original>
